<compile_context>
chip_gen: v7x
topology: tpu7x:2x2x1
jax: 0.10.0
libtpu: 0.0.40
codegen_flags: <defaults>
</compile_context>

<pallas_src>
import jax
import jax.numpy as jnp
from jax.experimental import pallas as pl
from jax.experimental.pallas import tpu as pltpu


def conv_bn_relu_kernel(p_ref, w_ref, bias_ref, o_ref):
    # p_ref:    (TM, K)   bf16 im2col patch tile
    # w_ref:    (K, TN)   bf16 conv weights with BN scale folded in
    # bias_ref: (1, TN)   f32 folded bias (conv bias + BN shift)
    # o_ref:    (TM, TN)  f32 output tile (lane-dense: TN % 128 == 0)
    acc = jnp.dot(p_ref[...], w_ref[...], preferred_element_type=jnp.float32)
    o_ref[...] = jnp.maximum(acc + bias_ref[...], 0.0).astype(o_ref.dtype)


def _pick_tm(M, desired=512):
    """M-tile: multiple of 8, divides M when possible (avoids padding the
    patch matrix in HBM), and leaves >= 2 grid steps for v7x's 2 TensorCores."""
    if M < 8:
        return 8
    tm = max(8, min(desired, (M // 8) * 8))
    if M >= 16 and tm * 2 > M:
        tm = max(8, ((M // 2) // 8) * 8)
    t = tm
    while t >= 8:
        if M % t == 0:
            return t
        t -= 8
    return tm  # no multiple-of-8 divisor of M; wrapper will pad M


def conv_block_forward(x_nchw, w, b, gamma, beta, run_mean, run_var,
                       eps=1e-5, desired_tm=512, desired_tn=256):
    """Forward pass equivalent to ConvBlock(in_channels, out_channels), eval mode."""
    N, Cin, H, W = x_nchw.shape
    Cout = w.shape[0]
    KH = KW = 3
    stride, pad = 2, 1
    Ho = (H + 2 * pad - KH) // stride + 1
    Wo = (W + 2 * pad - KW) // stride + 1
    K = KH * KW * Cin
    M = N * Ho * Wo

    # ---- plain-JAX glue: bf16 cast, NCHW -> NHWC, pad, im2col extraction ----
    # Cast first so all the layout shuffling / the materialized patch matrix
    # move half the bytes through HBM.
    x = jnp.transpose(x_nchw.astype(jnp.bfloat16), (0, 2, 3, 1))    # (N, H, W, Cin)
    x = jnp.pad(x, ((0, 0), (pad, pad), (pad, pad), (0, 0)))
    patches = []
    for kh in range(KH):
        for kw in range(KW):
            patches.append(
                x[:, kh: kh + stride * (Ho - 1) + 1: stride,
                     kw: kw + stride * (Wo - 1) + 1: stride, :])    # (N, Ho, Wo, Cin)
    patches = jnp.concatenate(patches, axis=-1)                     # (N, Ho, Wo, 9*Cin)
    patches = patches.reshape(M, K)                                 # bf16

    # ---- fold conv bias + eval-mode BN; scale goes into the weights ----
    scale = (gamma / jnp.sqrt(run_var + eps)).astype(jnp.float32)   # (Cout,)
    bias = ((b - run_mean) * scale + beta).astype(jnp.float32)      # (Cout,)

    # (kh, kw, cin, cout) ordering to match the patch concat order
    w_mat = jnp.transpose(w, (2, 3, 1, 0)).reshape(K, Cout).astype(jnp.float32)
    w_mat = (w_mat * scale[None, :]).astype(jnp.bfloat16)           # BN scale folded in

    # ---- pad Cout to a multiple of 128 for lane-dense output stores ----
    Cout_pad = ((Cout + 127) // 128) * 128
    if Cout_pad != Cout:
        w_mat = jnp.pad(w_mat, ((0, 0), (0, Cout_pad - Cout)))
        bias = jnp.pad(bias, ((0, Cout_pad - Cout),))
    bias = bias.reshape(1, Cout_pad)

    # ---- tiling ----
    tm = _pick_tm(M, desired_tm)
    M_pad = pl.cdiv(M, tm) * tm
    if M_pad != M:
        patches = jnp.pad(patches, ((0, M_pad - M), (0, 0)))

    tn = min(Cout_pad, max(128, (desired_tn // 128) * 128))
    while Cout_pad % tn != 0:
        tn -= 128

    # Per-step VMEM (bf16 patches/weights, f32 out, double-buffered) is tiny
    # for small Cin; stays well under the default scoped-VMEM limit everywhere.
    grid = (M_pad // tm, Cout_pad // tn)   # Cout axis innermost: patch tile DMA'd once per M step
    out = pl.pallas_call(
        conv_bn_relu_kernel,
        out_shape=jax.ShapeDtypeStruct((M_pad, Cout_pad), jnp.float32),
        grid_spec=pltpu.PrefetchScalarGridSpec(
            num_scalar_prefetch=0,
            grid=grid,
            in_specs=[
                pl.BlockSpec((tm, K), lambda i, j: (i, 0)),
                pl.BlockSpec((K, tn), lambda i, j: (0, j)),
                pl.BlockSpec((1, tn), lambda i, j: (0, j)),
            ],
            out_specs=pl.BlockSpec((tm, tn), lambda i, j: (i, j)),
        ),
        compiler_params=pltpu.CompilerParams(
            dimension_semantics=("parallel", "parallel")),
    )(patches, w_mat, bias)

    out = out[:M, :Cout].reshape(N, Ho, Wo, Cout)
    return jnp.transpose(out, (0, 3, 1, 2))                         # back to NCHW


def _reference(x_nchw, w, b, gamma, beta, run_mean, run_var, eps=1e-5):
    y = jax.lax.conv_general_dilated(
        x_nchw, w, window_strides=(2, 2), padding=((1, 1), (1, 1)),
        dimension_numbers=("NCHW", "OIHW", "NCHW"))
    y = y + b[None, :, None, None]
    y = (y - run_mean[None, :, None, None]) / jnp.sqrt(run_var + eps)[None, :, None, None]
    y = y * gamma[None, :, None, None] + beta[None, :, None, None]
    return jnp.maximum(y, 0.0)


if __name__ == "__main__":
    key = jax.random.PRNGKey(0)
    k_x, k_w, k_b = jax.random.split(key, 3)

    N, Cin, Cout, H, W = 2, 4, 8, 16, 16

    x = jax.random.normal(k_x, (N, Cin, H, W), dtype=jnp.float32)
    w = jax.random.normal(k_w, (Cout, Cin, 3, 3), dtype=jnp.float32) * 0.1
    b = jax.random.normal(k_b, (Cout,), dtype=jnp.float32) * 0.1

    # PyTorch BatchNorm2d default init (eval mode)
    gamma = jnp.ones((Cout,), dtype=jnp.float32)
    beta = jnp.zeros((Cout,), dtype=jnp.float32)
    run_mean = jnp.zeros((Cout,), dtype=jnp.float32)
    run_var = jnp.ones((Cout,), dtype=jnp.float32)

    out = conv_block_forward(x, w, b, gamma, beta, run_mean, run_var)
    out = jax.block_until_ready(out)

    ref = _reference(x, w, b, gamma, beta, run_mean, run_var)
    assert out.shape == (N, Cout, H // 2, W // 2)
    # bf16 patches/weights (f32 accumulation) -> relaxed tolerance vs f32 ref
    assert jnp.allclose(out, ref, atol=2e-2, rtol=2e-2)

    print("KERNEL_OK")
</pallas_src>

<mosaic_0001>
module attributes {stable_mosaic.version = 11 : i64} {
  func.func @conv_bn_relu_kernel(%arg0: i32, %arg1: i32, %arg2: memref<64x36xbf16, #tpu.memory_space<vmem>>, %arg3: memref<36x128xbf16, #tpu.memory_space<vmem>>, %arg4: memref<1x128xf32, #tpu.memory_space<vmem>>, %arg5: memref<64x128xf32, #tpu.memory_space<vmem>>) attributes {dimension_semantics = [#tpu.dimension_semantics<parallel>, #tpu.dimension_semantics<parallel>], iteration_bounds = array<i64: 2, 1>, scalar_prefetch = 0 : i64, scratch_operands = 0 : i64, tpu.core_type = #tpu.core_type<tc>, window_params = [{transform_indices = @transform_0, window_bounds = array<i64: 64, 36>}, {transform_indices = @transform_1, window_bounds = array<i64: 36, 128>}, {transform_indices = @transform_2, window_bounds = array<i64: 1, 128>}, {transform_indices = @transform_3, window_bounds = array<i64: 64, 128>}]} {
    %c0 = arith.constant 0 : index
    %c0_0 = arith.constant 0 : index
    %0 = vector.load %arg2[%c0, %c0_0] : memref<64x36xbf16, #tpu.memory_space<vmem>>, vector<64x36xbf16>
    %c0_1 = arith.constant 0 : index
    %c0_2 = arith.constant 0 : index
    %1 = vector.load %arg3[%c0_1, %c0_2] : memref<36x128xbf16, #tpu.memory_space<vmem>>, vector<36x128xbf16>
    %cst = arith.constant dense<0.000000e+00> : vector<64x128xf32>
    %2 = tpu.matmul %0, %1, %cst {dimension_numbers = #tpu.dot_dimension_numbers<[1], [0], [0], [1], [0, 0, 1, 1], [], []>} : vector<64x36xbf16>, vector<36x128xbf16>, vector<64x128xf32> -> vector<64x128xf32>
    %c0_3 = arith.constant 0 : index
    %c0_4 = arith.constant 0 : index
    %3 = vector.load %arg4[%c0_3, %c0_4] : memref<1x128xf32, #tpu.memory_space<vmem>>, vector<1x128xf32>
    %4 = vector.broadcast %3 : vector<1x128xf32> to vector<64x128xf32>
    %5 = arith.addf %2, %4 : vector<64x128xf32>
    %cst_5 = arith.constant 0.000000e+00 : f32
    %6 = vector.broadcast %cst_5 : f32 to vector<64x128xf32>
    %7 = arith.maximumf %5, %6 : vector<64x128xf32>
    %c0_6 = arith.constant 0 : index
    %c0_7 = arith.constant 0 : index
    %8 = vector.load %arg5[%c0_6, %c0_7] : memref<64x128xf32, #tpu.memory_space<vmem>>, vector<64x128xf32>
    tpu.vector_store %arg5[%c0_6, %c0_7], %7 {strides = array<i32>} : memref<64x128xf32, #tpu.memory_space<vmem>>, vector<64x128xf32>,
    return
  }
  func.func @transform_0(%arg0: i32, %arg1: i32) -> (i32, i32) {
    %c0_i32 = arith.constant 0 : i32
    %c0_i32_0 = arith.constant 0 : i32
    return %arg0, %c0_i32 : i32, i32
  }
  func.func @transform_1(%arg0: i32, %arg1: i32) -> (i32, i32) {
    %c0_i32 = arith.constant 0 : i32
    %c0_i32_0 = arith.constant 0 : i32
    return %c0_i32, %arg1 : i32, i32
  }
  func.func @transform_2(%arg0: i32, %arg1: i32) -> (i32, i32) {
    %c0_i32 = arith.constant 0 : i32
    %c0_i32_0 = arith.constant 0 : i32
    return %c0_i32, %arg1 : i32, i32
  }
  func.func @transform_3(%arg0: i32, %arg1: i32) -> (i32, i32) {
    %c0_i32 = arith.constant 0 : i32
    return %arg0, %arg1 : i32, i32
  }
}

</mosaic_0001>

<llo_original>
// kernel: tpu_custom_call.1
$region0: #{tpu_custom_call.1}
  #allocation0 [shape = 'u32[]', space=smem, size = 0x4, offset = 0x4, fixed_abs, tag = 'smem constant byte address 0x4 - core index']
  #allocation1 [shape = 'u32[144,128]{1,0:T(1,128)}', space=vmem, size = 0x12000, scoped, tag = 'internal scratch']
  %s0 = inlined_call_operand.vmem [shape: bf16[128,36], index: 0, kind: input, shape index: {}]
  %s1 = inlined_call_operand.vmem [shape: bf16[36,128], index: 1, kind: input, shape index: {}]
  %s2 = inlined_call_operand.vmem [shape: f32[1,128], index: 2, kind: input, shape index: {}]
  %s3 = inlined_call_operand.hbm [shape: f32[128,128], index: 3, kind: output, shape index: {}]
  %s4 = sld [smem:[#allocation0]]
  $region45: #{tpu_custom_call.1} parent=0
    _
  %s6 = ssub.s32 1, %s4
  %s7 = scalar_select 0, %s6, %s4
  $region1: #{tpu_custom_call.1} parent=0
    #allocation2 [shape = 'u8[65536]{0}', space=vmem, size = 0x10000, scoped, tag = 'output window, operand 0']
    #allocation3 [shape = 's32[2]{0}', space=sflag, size = 0x8, scoped, tag = 'scoped memory for tpu_custom_call.1']
    %8 = vsyncpa [#allocation3], 0
    %s9 = scalar_lea.sflag [#allocation3], 1
    %10 = vsyncpa %s9, 0
    loop: start=0, step=1, limit=4
    $region2: #{tpu_custom_call.1} parent=1 // loop_pre_header
      _
    $region3: #{tpu_custom_call.1} parent=1 // loop_header
      %s12 = sphi 0, %s16
      %p13 = scmp.ge.s32.totalorder %s12, 4
      %s19 = sphi 0, %s31
      %s20 = sphi 0, %s27
      %s21 = sphi 0, %s19
      %s22 = sphi 0, %s20
      %s23 = sphi 0, %s21
      %s24 = sphi 0, %s22
      %s34 = sphi 0, %s36
      %s37 = sphi 0, %s34
      %s38 = sphi 0, %s37
      %s54 = sphi 0, %s38
      %s60 = sphi 0, %s62
      %s63 = sphi 0, %s60
      %s64 = sphi 0, %s63
      %s80 = sphi 0, %s64
      %s86 = sphi 0, %s88
      %s89 = sphi 0, %s86
      %s90 = sphi 0, %s89
      %s106 = sphi 0, %s90
      %s114 = sphi 0, %s116
      %s117 = sphi 0, %s114
      %s118 = sphi 0, %s117
      %s134 = sphi 0, %s118
    $region4: #{tpu_custom_call.1} parent=1 // loop_header_branch
      %15 = sbr.rel (%p13) target = $region8
    $region5: #{tpu_custom_call.1} parent=1 // loop_body
      %s17 = ssub.s32 %s12, 1
      %s18 = ssub.s32 %s12, 2
      %s25 = sadd.s32 1, %s20
      %p26 = scmp.ge.s32.totalorder %s25, 1
      %s27 = scalar_select %p26, 0, %s25
      %s28 = sadd.s32 1, %s19
      %s29 = scalar_select %p26, %s28, %s19
      %p30 = scmp.ge.s32.totalorder %s29, 2
      %s31 = scalar_select %p30, 0, %s29
      %s32 = ssub.s32 %s19, %s31
      %p33 = scmp.eq.s32.totalorder %s32, 0
      %s35 = sadd.s32 %s34, 1
      %s36 = scalar_select %p33, %s34, %s35
      %p39 = pneg %p33
      %p40 = scmp.eq.s32.totalorder %s12, 1
      %p41 = por %p39, %p40
      %p42 = scmp.ne.s32.totalorder %s34, %s37
      %p43 = scmp.eq.s32.totalorder %s12, 0
      %p44 = por %p42, %p43
      %p45 = scmp.ne.s32.totalorder %s34, %s37
      %p46 = scmp.eq.s32.totalorder %s17, 1
      %p47 = por %p45, %p46
      %p48 = scmp.ne.s32.totalorder %s37, %s38
      %p49 = scmp.eq.s32.totalorder %s17, 0
      %p50 = por %p48, %p49
      %p51 = scmp.ne.s32.totalorder %s37, %s38
      %p52 = scmp.eq.s32.totalorder %s18, 1
      %p53 = por %p51, %p52
      %p55 = scmp.ne.s32.totalorder %s38, %s54
      %p56 = scmp.eq.s32.totalorder %s18, 0
      %p57 = por %p55, %p56
      %s58 = ssub.s32 %s20, %s27
      %p59 = scmp.eq.s32.totalorder %s58, 0
      %s61 = sadd.s32 %s60, 1
      %s62 = scalar_select %p59, %s60, %s61
      %p65 = pneg %p59
      %p66 = scmp.eq.s32.totalorder %s12, 1
      %p67 = por %p65, %p66
      %p68 = scmp.ne.s32.totalorder %s60, %s63
      %p69 = scmp.eq.s32.totalorder %s12, 0
      %p70 = por %p68, %p69
      %p71 = scmp.ne.s32.totalorder %s60, %s63
      %p72 = scmp.eq.s32.totalorder %s17, 1
      %p73 = por %p71, %p72
      %p74 = scmp.ne.s32.totalorder %s63, %s64
      %p75 = scmp.eq.s32.totalorder %s17, 0
      %p76 = por %p74, %p75
      %p77 = scmp.ne.s32.totalorder %s63, %s64
      %p78 = scmp.eq.s32.totalorder %s18, 1
      %p79 = por %p77, %p78
      %p81 = scmp.ne.s32.totalorder %s64, %s80
      %p82 = scmp.eq.s32.totalorder %s18, 0
      %p83 = por %p81, %p82
      %s84 = ssub.s32 %s20, %s27
      %p85 = scmp.eq.s32.totalorder %s84, 0
      %s87 = sadd.s32 %s86, 1
      %s88 = scalar_select %p85, %s86, %s87
      %p91 = pneg %p85
      %p92 = scmp.eq.s32.totalorder %s12, 1
      %p93 = por %p91, %p92
      %p94 = scmp.ne.s32.totalorder %s86, %s89
      %p95 = scmp.eq.s32.totalorder %s12, 0
      %p96 = por %p94, %p95
      %p97 = scmp.ne.s32.totalorder %s86, %s89
      %p98 = scmp.eq.s32.totalorder %s17, 1
      %p99 = por %p97, %p98
      %p100 = scmp.ne.s32.totalorder %s89, %s90
      %p101 = scmp.eq.s32.totalorder %s17, 0
      %p102 = por %p100, %p101
      %p103 = scmp.ne.s32.totalorder %s89, %s90
      %p104 = scmp.eq.s32.totalorder %s18, 1
      %p105 = por %p103, %p104
      %p107 = scmp.ne.s32.totalorder %s90, %s106
      %p108 = scmp.eq.s32.totalorder %s18, 0
      %p109 = por %p107, %p108
      %s110 = ssub.s32 %s19, %s31
      %s111 = ssub.s32 %s20, %s27
      %s112 = sor.u32 %s110, %s111
      %p113 = scmp.eq.s32.totalorder %s112, 0
      %s115 = sadd.s32 %s114, 1
      %s116 = scalar_select %p113, %s114, %s115
      %p119 = pneg %p113
      %p120 = scmp.eq.s32.totalorder %s12, 1
      %p121 = por %p119, %p120
      %p122 = scmp.ne.s32.totalorder %s114, %s117
      %p123 = scmp.eq.s32.totalorder %s12, 0
      %p124 = por %p122, %p123
      %p125 = scmp.ne.s32.totalorder %s114, %s117
      %p126 = scmp.eq.s32.totalorder %s17, 1
      %p127 = por %p125, %p126
      %p128 = scmp.ne.s32.totalorder %s117, %s118
      %p129 = scmp.eq.s32.totalorder %s17, 0
      %p130 = por %p128, %p129
      %p131 = scmp.ne.s32.totalorder %s117, %s118
      %p132 = scmp.eq.s32.totalorder %s18, 1
      %p133 = por %p131, %p132
      %p135 = scmp.ne.s32.totalorder %s118, %s134
      %p136 = scmp.eq.s32.totalorder %s18, 0
      %p137 = por %p135, %p136
      %p138 = scmp.le.s32.totalorder 1, %s12
      %p139 = scmp.lt.s32.totalorder %s12, 3
      %p140 = pnand %p138, %p139
      %p141 = pneg %p140
      // Predicated region
      $region9: #{tpu_custom_call.1} parent=5 // pred_check
        _
      $region10: #{tpu_custom_call.1} parent=5 // pred_check_branch
        %143 = sbr.rel (%p140) target = $region12
      $region11: #{tpu_custom_call.1} parent=5 // pred_region
        %s144 = ssub.s32 %s12, 1
        // Predicated region
        $region13: #{tpu_custom_call.1} parent=11 // pred_check
          %p145 = pneg %p76
        $region14: #{tpu_custom_call.1} parent=11 // pred_check_branch
          %147 = sbr.rel (%p145) target = $region16
        $region15: #{tpu_custom_call.1} parent=11 // pred_region
          %p148 = scmp.lt.s32.totalorder %s22, 0
          %s149 = scalar_select %p148, %s22, 0
          %s150 = smul.addr %s149, 4
          %s151 = scalar_lea.vmem %s1, %s150
        $region16: #{tpu_custom_call.1} parent=11 // pred_fallthru
          _
        // Predicated region
        $region17: #{tpu_custom_call.1} parent=11 // pred_check
          %p152 = pneg %p102
        $region18: #{tpu_custom_call.1} parent=11 // pred_check_branch
          %154 = sbr.rel (%p152) target = $region20
        $region19: #{tpu_custom_call.1} parent=11 // pred_region
          %p155 = scmp.lt.s32.totalorder %s22, 0
          %s156 = scalar_select %p155, %s22, 0
          %s157 = scalar_lea.vmem %s2, %s156
        $region20: #{tpu_custom_call.1} parent=11 // pred_fallthru
          _
      $region12: #{tpu_custom_call.1} parent=5 // pred_fallthru
        _
      %p158 = scmp.lt.s32.totalorder %s12, 2
      // Predicated region
      $region21: #{tpu_custom_call.1} parent=5 // pred_check
        %p159 = pneg %p158
      $region22: #{tpu_custom_call.1} parent=5 // pred_check_branch
        %161 = sbr.rel (%p159) target = $region24
      $region23: #{tpu_custom_call.1} parent=5 // pred_region
        // Predicated region
        $region25: #{tpu_custom_call.1} parent=23 // pred_check
          %p162 = pneg %p44
        $region26: #{tpu_custom_call.1} parent=23 // pred_check_branch
          %164 = sbr.rel (%p162) target = $region28
        $region27: #{tpu_custom_call.1} parent=23 // pred_region
          %s165 = smul.u32 8, %s19
          %p166 = scmp.lt.s32.totalorder %s165, 15
          %s167 = scalar_select %p166, %s165, 15
          %s168 = smul.addr %s167, 4
          %s169 = scalar_lea.vmem %s0, %s168
          %s170 = smul.u32 8, %s19
        $region28: #{tpu_custom_call.1} parent=23 // pred_fallthru
          _
      $region24: #{tpu_custom_call.1} parent=5 // pred_fallthru
        _
      %p171 = scmp.le.s32.totalorder 1, %s12
      %p172 = scmp.lt.s32.totalorder %s12, 3
      %p173 = pnand %p171, %p172
      %p174 = pneg %p173
      // Predicated region
      $region29: #{tpu_custom_call.1} parent=5 // pred_check
        _
      $region30: #{tpu_custom_call.1} parent=5 // pred_check_branch
        %176 = sbr.rel (%p173) target = $region32
      $region31: #{tpu_custom_call.1} parent=5 // pred_region
        %s177 = ssub.s32 %s12, 1
        %s178 = smul.u32 8, %s21
        %p179 = scmp.lt.s32.totalorder %s178, 15
        %s180 = scalar_select %p179, %s178, 15
        %s181 = smul.addr %s180, 4
        %s182 = scalar_lea.vmem %s0, %s181
        %p183 = pneg %p50
        %p184 = pneg %p47
        %p185 = scmp.lt.s32.totalorder %s22, 0
        %s186 = scalar_select %p185, %s22, 0
        %s187 = smul.addr %s186, 4
        %s188 = scalar_lea.vmem %s1, %s187
        %p189 = pneg %p76
        %p190 = pneg %p73
        %p191 = scmp.lt.s32.totalorder %s22, 0
        %s192 = scalar_select %p191, %s22, 0
        %s193 = scalar_lea.vmem %s2, %s192
        %p194 = pneg %p102
        %p195 = pneg %p99
        %p196 = pneg %p130
        %p197 = pneg %p127
        %s198 = sand.u32 %s117, 1
        %s199 = scalar_lea.sflag [#allocation3], %s198
        %s200 = sand.u32 %s117, 1
        %s201 = smul.addr %s200, 64
        %s202 = scalar_lea.vmem [#allocation2], %s201
        %s203 = smul.u32 8, %s21
        %p204 = scmp.lt.s32.totalorder %s203, 15
        %s205 = scalar_select %p204, %s203, 15
        %s206 = smul.addr %s205, 4
        %s207 = scalar_lea.vmem %s0, %s206
        %s208 = smul.u32 8, %s21
        %p209 = scmp.lt.s32.totalorder %s22, 0
        %s210 = scalar_select %p209, %s22, 0
        %s211 = smul.addr %s210, 4
        %s212 = scalar_lea.vmem %s1, %s211
        %p213 = scmp.lt.s32.totalorder %s22, 0
        %s214 = scalar_select %p213, %s22, 0
        %s215 = scalar_lea.vmem %s2, %s214
        %s216 = smul.u32 8, %s21
        %v218 = vld [vmem:[%s207] sm:$0xf]
        %v219 = vld [vmem:[%s207 + $0x4] sm:$0xf]
        %v220 = vld [vmem:[%s207 + $0x8] sm:$0xf]
        %v221 = vld [vmem:[%s207 + $0xc] sm:$0xf]
        %v222 = vld [vmem:[%s207 + $0x10] sm:$0xf]
        %v223 = vld [vmem:[%s207 + $0x14] sm:$0xf]
        %v224 = vld [vmem:[%s207 + $0x18] sm:$0xf]
        %v225 = vld [vmem:[%s207 + $0x1c] sm:$0xf]
        %v226 = vld [vmem:[%s212] sm:$0xf]
        %v227 = vld [vmem:[%s212 + $0x4] sm:$0xf]
        %v228 = vld [vmem:[%s212 + $0x8] sm:$0xf]
        %v229 = vld [vmem:[%s212 + $0xc] sm:$0xf]
        %v230 = vld [vmem:[%s212 + $0x10] sm:$0x3]
        %v231 = vld [vmem:[%s215] sm:$0x1]
        %v233 = vlaneseq
        %v234 = vshrl.u32 %v233, 7
        %v235 = vsub.s32 0, %v234
        %v236 = vrot.slane %v231, %v235
        %v246 = vunpack.c.l.b16 %v218
        %v247 = vunpack.c.l.b16 %v219
        %v248 = vunpack.c.l.b16 %v220
        %v249 = vunpack.c.l.b16 %v221
        %v250 = vunpack.c.l.b16 %v222
        %v251 = vunpack.c.l.b16 %v223
        %v252 = vunpack.c.l.b16 %v224
        %v253 = vunpack.c.l.b16 %v225
        %v254 = vpack.c.b16 %v247, %v246
        %v255 = vpack.c.b16 %v249, %v248
        %v256 = vpack.c.b16 %v251, %v250
        %v257 = vpack.c.b16 %v253, %v252
        %v263 = vunpack.c.l.b16 %v226
        %v264 = vunpack.c.l.b16 %v227
        %v265 = vunpack.c.l.b16 %v228
        %v266 = vunpack.c.l.b16 %v229
        %v267 = vunpack.c.l.b16 %v230
        %v268 = vpack.c.b16 %v264, %v263
        %v269 = vpack.c.b16 %v266, %v265
        %v270 = vpack.c.b16 %v267, %v267
        %vm273 = vcmask 293888
        %v275 = vsel %vm273, %v254, 0
        %v278 = vsel %vm273, %v255, 0
        %v281 = vsel %vm273, %v256, 0
        %v284 = vsel %vm273, %v257, 0
        %vm286 = vcmask 1041408
        %v288 = vsel %vm286, %v270, 0
        %290 = vmatprep.subr.bf16.mxu0 0
        %291 = vmatpush1.bf16.msra.mxu0 %v268
        %292 = vmatprep.subr.bf16.mxu0 0
        %293 = vmatpush1.bf16.msra.mxu0 %v269
        %294 = vmatprep.subr.bf16.mxu0 0
        %295 = vmatpush1.bf16.msra.mxu0 %v288
        %296 = vmatprep.subr.bf16.mxu0 0
        %297 = vmatpush1.bf16.msra.mxu0 0
        %298 = vmatprep.subr.bf16.mxu0 0
        %299 = vmatpush1.bf16.msra.mxu0 0
        %300 = vmatprep.subr.bf16.mxu0 0
        %301 = vmatpush1.bf16.msra.mxu0 0
        %302 = vmatprep.subr.bf16.mxu0 0
        %303 = vmatpush1.bf16.msra.mxu0 0
        %304 = vmatprep.subr.bf16.mxu0 0
        %305 = vmatpush1.bf16.msra.mxu0 0
        %306 = vmatprep.subr.bf16.mxu0 0
        %307 = vmatpush1.bf16.msra.mxu0 0
        %308 = vmatprep.subr.bf16.mxu0 0
        %309 = vmatpush1.bf16.msra.mxu0 0
        %310 = vmatprep.subr.bf16.mxu0 0
        %311 = vmatpush1.bf16.msra.mxu0 0
        %312 = vmatprep.subr.bf16.mxu0 0
        %313 = vmatpush1.bf16.msra.mxu0 0
        %314 = vmatprep.subr.bf16.mxu0 0
        %315 = vmatpush1.bf16.msra.mxu0 0
        %316 = vmatprep.subr.bf16.mxu0 0
        %317 = vmatpush1.bf16.msra.mxu0 0
        %318 = vmatprep.subr.bf16.mxu0 0
        %319 = vmatpush1.bf16.msra.mxu0 0
        %320 = vmatprep.subr.bf16.mxu0 0
        %321 = vmatpush1.bf16.msra.mxu0 0
        %322 = vmatprep.mubr.bf16.mxu0 0
        %323 = vmatmul.mubr.bf16.gmra.mrb[0].mxu0 %v275
        %v324 = vpop.f32.mrb[0].mxu0
        %v325 = vadd.f32 %v236, %v324
        %v326 = vpop.f32.mrb[0].mxu0
        %v327 = vpop.f32.mrb[0].mxu0
        %v328 = vadd.f32 %v236, %v327
        %v329 = vpop.f32.mrb[0].mxu0
        %330 = vmatprep.mubr.bf16.mxu0 0
        %331 = vmatmul.mubr.bf16.gmra.mrb[0].mxu0 %v278
        %v332 = vpop.f32.mrb[0].mxu0
        %v333 = vadd.f32 %v236, %v332
        %v334 = vpop.f32.mrb[0].mxu0
        %v335 = vpop.f32.mrb[0].mxu0
        %v336 = vadd.f32 %v236, %v335
        %v337 = vpop.f32.mrb[0].mxu0
        %338 = vmatprep.mubr.bf16.mxu0 0
        %339 = vmatmul.mubr.bf16.gmra.mrb[0].mxu0 %v281
        %v340 = vpop.f32.mrb[0].mxu0
        %v341 = vadd.f32 %v236, %v340
        %v342 = vpop.f32.mrb[0].mxu0
        %v343 = vpop.f32.mrb[0].mxu0
        %v344 = vadd.f32 %v236, %v343
        %v345 = vpop.f32.mrb[0].mxu0
        %346 = vmatprep.mubr.bf16.mxu0 0
        %347 = vmatmul.mubr.bf16.gmra.mrb[0].mxu0 %v284
        %v348 = vpop.f32.mrb[0].mxu0
        %v349 = vadd.f32 %v236, %v348
        %v350 = vpop.f32.mrb[0].mxu0
        %v351 = vpop.f32.mrb[0].mxu0
        %v352 = vadd.f32 %v236, %v351
        %v353 = vpop.f32.mrb[0].mxu0
        %354 = vdwg.mxu0
        %v355 = vmax.f32 %v325, 0.0
        %v356 = vmax.f32 %v328, 0.0
        %v357 = vmax.f32 %v333, 0.0
        %v358 = vmax.f32 %v336, 0.0
        %v359 = vmax.f32 %v341, 0.0
        %v360 = vmax.f32 %v344, 0.0
        %v361 = vmax.f32 %v349, 0.0
        %v362 = vmax.f32 %v352, 0.0
        %363 = vst [vmem:[%s202] sm:$0xff] %v355
        %364 = vst [vmem:[%s202 + $0x8] sm:$0xff] %v356
        %365 = vst [vmem:[%s202 + $0x10] sm:$0xff] %v357
        %366 = vst [vmem:[%s202 + $0x18] sm:$0xff] %v358
        %367 = vst [vmem:[%s202 + $0x20] sm:$0xff] %v359
        %368 = vst [vmem:[%s202 + $0x28] sm:$0xff] %v360
        %369 = vst [vmem:[%s202 + $0x30] sm:$0xff] %v361
        %370 = vst [vmem:[%s202 + $0x38] sm:$0xff] %v362
        %s371 = sand.u32 %s117, 1
        %s372 = scalar_lea.sflag [#allocation3], %s371
        %s373 = sand.u32 %s117, 1
        %s374 = smul.addr %s373, 64
        %s375 = scalar_lea.vmem [#allocation2], %s374
        // Predicated region
        $region33: #{tpu_custom_call.1} parent=31 // pred_check
          %p376 = pneg %p127
        $region34: #{tpu_custom_call.1} parent=31 // pred_check_branch
          %378 = sbr.rel (%p376) target = $region36
        $region35: #{tpu_custom_call.1} parent=31 // pred_region
          %s379 = smul.u32 8, %s21
          %s381 = ssub.s32 1024, 1024
          %382 = vsyncadd %s372, %s381
          %s383 = sadd.s32 %s22, %s379
          %s384 = smul.addr %s383, 128
          %s385 = scalar_lea.hbm %s3, %s384
          %s386 = sshll.u32 %s375, 4
          %s387 = int_to_ptr.vmem [resolvable:$true] %s386
          %392 = dma.vmem_to_hbm [thread:$0]  %s387, 1024, %s385, %s372, 128, 128, 8
        $region36: #{tpu_custom_call.1} parent=31 // pred_fallthru
          _
      $region32: #{tpu_custom_call.1} parent=5 // pred_fallthru
        _
      %p393 = scmp.le.s32.totalorder 2, %s12
      // Predicated region
      $region37: #{tpu_custom_call.1} parent=5 // pred_check
        %p394 = pneg %p393
      $region38: #{tpu_custom_call.1} parent=5 // pred_check_branch
        %396 = sbr.rel (%p394) target = $region40
      $region39: #{tpu_custom_call.1} parent=5 // pred_region
        %s397 = ssub.s32 %s12, 2
        // Predicated region
        $region41: #{tpu_custom_call.1} parent=39 // pred_check
          %p398 = pneg %p133
        $region42: #{tpu_custom_call.1} parent=39 // pred_check_branch
          %400 = sbr.rel (%p398) target = $region44
        $region43: #{tpu_custom_call.1} parent=39 // pred_region
          %s401 = sand.u32 %s118, 1
          %s402 = scalar_lea.sflag [#allocation3], %s401
          %s403 = sand.u32 %s118, 1
          %s404 = smul.addr %s403, 64
          %s405 = scalar_lea.vmem [#allocation2], %s404
          %406 = dma.done %s402, 1024
        $region44: #{tpu_custom_call.1} parent=39 // pred_fallthru
          _
      $region40: #{tpu_custom_call.1} parent=5 // pred_fallthru
        _
    $region6: #{tpu_custom_call.1} parent=1 // loop_footer
      %s16 = sadd.s32 1, %s12
    $region7: #{tpu_custom_call.1} parent=1 // loop_footer_branch
      %11 = sbr.rel target = $region3
    $region8: #{tpu_custom_call.1} parent=1 // loop_exit
      _
    %407 = vsyncpa [#allocation3], 1
    %s408 = scalar_lea.sflag [#allocation3], 1
    %409 = vsyncpa %s408, 1

</llo_original>
